<compile_context>
chip_gen: v6e
topology: v6e:2x2x1
jax: 0.10.0
libtpu: 0.0.40
codegen_flags: <defaults>
</compile_context>

<pallas_src>
import functools

import jax
import jax.numpy as jnp
from jax.experimental import pallas as pl
from jax.experimental.pallas import tpu as pltpu


def _round_up(v, m):
    return ((v + m - 1) // m) * m


# ----------------------------- Pallas kernel ---------------------------------
def _encoder_kernel(depth, out_pad, xin_ref, w1_ref, wh_ref, b_ref, y_ref):
    """Whole MLP forward for one batch tile.

    xin_ref: (TB, IN_PAD)  x ++ cond ++ zeros, lane-dense
    w1_ref : (IN_PAD, H)   layer-0 weight (zero-padded)
    wh_ref : (depth+1, H, H) hidden weights; last slot = final weight with the
             logvar columns duplicated -> emits [mu, lv, lv] directly
    b_ref  : (depth+2, H)  biases (zero-padded lanes; final bias also duplicated)
    y_ref  : (TB, out_pad) small lane output slab (out_pad << 128)
    """
    # Layer 0: Linear -> Identity(bn) -> ReLU (cond already folded into xin).
    h = jnp.dot(xin_ref[...], w1_ref[...], preferred_element_type=jnp.float32)
    h = jnp.maximum(h + b_ref[0:1, :], 0.0)

    # Hidden blocks: Linear -> Identity(bn) -> ReLU.
    for l in range(depth):
        h = jnp.dot(h, wh_ref[l], preferred_element_type=jnp.float32)
        h = jnp.maximum(h + b_ref[1 + l:2 + l, :], 0.0)

    # Final Linear (no activation); columns already hold [mu, lv, lv].
    y = jnp.dot(h, wh_ref[depth], preferred_element_type=jnp.float32)
    y = y + b_ref[1 + depth:2 + depth, :]
    y_ref[...] = y[:, :out_pad]          # masked vst of a few lanes; tiny HBM writeback


# ------------------------------ JAX wrapper -----------------------------------
def encoder_forward(x, cond, w1_slab, wh_slab, b_slab, *, depth, latent_dim,
                    use_cond=True, batch_tile=4096):
    B = x.shape[0]
    in_pad, H = w1_slab.shape
    out_dup = 3 * latent_dim - 2                      # [mu (latent), lv, lv]
    out_pad = max(8, _round_up(out_dup, 8))

    # Fold cond into one zero-padded lane-dense input slab (single layer-0 matmul).
    parts = [x, cond] if use_cond else [x]
    used = sum(p.shape[-1] for p in parts)
    if used < in_pad:
        parts.append(jnp.zeros((B, in_pad - used), x.dtype))
    xin = jnp.concatenate(parts, axis=-1) if len(parts) > 1 else parts[0]

    # Batch tile: big (amortize ~0.35us/step overhead) but capped so the grid has
    # >=2 iterations when B > 8 (keeps both TCs busy on v7x). Always a multiple of 8.
    tb = min(batch_tile, max(8, _round_up(-(-B // 2), 8)))
    grid = (pl.cdiv(B, tb),)

    kernel = functools.partial(_encoder_kernel, depth, out_pad)

    out = pl.pallas_call(
        kernel,
        grid=grid,
        in_specs=[
            pl.BlockSpec((tb, in_pad), lambda i: (i, 0)),
            # Weights / biases: constant index maps -> stay VMEM-resident across steps.
            pl.BlockSpec(w1_slab.shape, lambda i: (0, 0)),
            pl.BlockSpec(wh_slab.shape, lambda i: (0, 0, 0)),
            pl.BlockSpec(b_slab.shape, lambda i: (0, 0)),
        ],
        out_specs=pl.BlockSpec((tb, out_pad), lambda i: (i, 0)),
        out_shape=jax.ShapeDtypeStruct((B, out_pad), jnp.float32),
        compiler_params=pltpu.CompilerParams(
            dimension_semantics=("parallel",),      # megacore sharding where available
            vmem_limit_bytes=32 * 1024 * 1024,      # needed on v5e (16 MiB default)
        ),
    )(xin, w1_slab, wh_slab, b_slab)

    # Output already holds [mu, lv, lv]; wrapper just slices (no concat, no re-read
    # of a wide slab).
    mu = out[:, :latent_dim]
    logvar = out[:, latent_dim:out_dup]
    return mu, logvar


# --------------------------- parameter construction --------------------------
def init_encoder_params(key, *, data_dim, cond_dim, width, depth, latent_dim,
                        use_cond=True):
    """Mimics nn.Linear default init; weights stored as (in, out)."""
    input_dim = data_dim + (cond_dim if use_cond else 0)
    output_dim = 2 * latent_dim - 1
    dims = [input_dim] + [width] * (depth + 1) + [output_dim]

    params = []
    for i in range(len(dims) - 1):
        fan_in, fan_out = dims[i], dims[i + 1]
        key, kw, kb = jax.random.split(key, 3)
        bound = 1.0 / float(fan_in) ** 0.5
        w = jax.random.uniform(kw, (fan_in, fan_out), jnp.float32, -bound, bound)
        b = jax.random.uniform(kb, (fan_out,), jnp.float32, -bound, bound)
        params.append((w, b))
    return params


def pack_encoder_params(params, *, data_dim, cond_dim, width, depth, latent_dim,
                        use_cond=True):
    """Pack linears into three zero-padded slabs (layer-0 W, hidden+final W, biases)."""
    out_dup = 3 * latent_dim - 2
    input_dim = data_dim + (cond_dim if use_cond else 0)
    in_pad = _round_up(input_dim, 128)
    H = _round_up(max(width, out_dup), 128)

    w1, b1 = params[0]
    w1_slab = jnp.zeros((in_pad, H), jnp.float32).at[:input_dim, :width].set(w1)
    b_slab = jnp.zeros((depth + 2, H), jnp.float32).at[0, :width].set(b1)

    wh_slab = jnp.zeros((depth + 1, H, H), jnp.float32)
    for l in range(depth):
        w, b = params[1 + l]
        wh_slab = wh_slab.at[l, :width, :width].set(w)
        b_slab = b_slab.at[1 + l, :width].set(b)

    # Final layer: duplicate the logvar columns so the kernel emits [mu, lv, lv].
    wf, bf = params[-1]
    wf_dup = jnp.concatenate([wf, wf[:, latent_dim:]], axis=-1)
    bf_dup = jnp.concatenate([bf, bf[latent_dim:]], axis=-1)
    wh_slab = wh_slab.at[depth, :width, :out_dup].set(wf_dup)
    b_slab = b_slab.at[1 + depth, :out_dup].set(bf_dup)
    return w1_slab, wh_slab, b_slab


# ------------------------------ reference (JAX) -------------------------------
def encoder_reference(x, cond, params, *, latent_dim, use_cond=True):
    h = jnp.concatenate([x, cond], axis=-1) if use_cond else x
    for w, b in params[:-1]:
        h = jnp.maximum(h @ w + b, 0.0)
    w, b = params[-1]
    y = h @ w + b
    mu = y[:, :latent_dim]
    lv = y[:, latent_dim:]
    return mu, jnp.concatenate([lv, lv], axis=-1)


# ----------------------------------- main -------------------------------------
if __name__ == "__main__":
    # Small shapes consistent with the module's forward (batch of flat vectors).
    B = 64
    DATA_DIM = 64
    COND_DIM = 4
    WIDTH = 64
    DEPTH = 2
    LATENT_DIM = 2

    key = jax.random.PRNGKey(0)
    kx, kc, kp = jax.random.split(key, 3)
    x = jax.random.normal(kx, (B, DATA_DIM), jnp.float32)
    cond = jax.random.normal(kc, (B, COND_DIM), jnp.float32)

    params = init_encoder_params(
        kp, data_dim=DATA_DIM, cond_dim=COND_DIM, width=WIDTH,
        depth=DEPTH, latent_dim=LATENT_DIM, use_cond=True)
    w1_slab, wh_slab, b_slab = pack_encoder_params(
        params, data_dim=DATA_DIM, cond_dim=COND_DIM, width=WIDTH,
        depth=DEPTH, latent_dim=LATENT_DIM, use_cond=True)

    fwd = jax.jit(functools.partial(
        encoder_forward, depth=DEPTH, latent_dim=LATENT_DIM, use_cond=True))

    mu, logvar = fwd(x, cond, w1_slab, wh_slab, b_slab)
    mu, logvar = jax.block_until_ready((mu, logvar))

    mu_ref, logvar_ref = encoder_reference(x, cond, params,
                                           latent_dim=LATENT_DIM, use_cond=True)

    assert mu.shape == (B, LATENT_DIM)
    assert logvar.shape == (B, 2 * (LATENT_DIM - 1))
    assert jnp.allclose(mu, mu_ref, atol=1e-4, rtol=1e-4), \
        f"mu mismatch, max diff {jnp.max(jnp.abs(mu - mu_ref))}"
    assert jnp.allclose(logvar, logvar_ref, atol=1e-4, rtol=1e-4), \
        f"logvar mismatch, max diff {jnp.max(jnp.abs(logvar - logvar_ref))}"

    print("KERNEL_OK")
</pallas_src>

<mosaic_0001>
module attributes {stable_mosaic.version = 11 : i64} {
  func.func @_encoder_kernel(%arg0: i32, %arg1: memref<32x128xf32, #tpu.memory_space<vmem>>, %arg2: memref<128x128xf32, #tpu.memory_space<vmem>>, %arg3: memref<3x128x128xf32, #tpu.memory_space<vmem>>, %arg4: memref<4x128xf32, #tpu.memory_space<vmem>>, %arg5: memref<32x8xf32, #tpu.memory_space<vmem>>) attributes {dimension_semantics = [#tpu.dimension_semantics<parallel>], iteration_bounds = array<i64: 2>, scalar_prefetch = 0 : i64, scratch_operands = 0 : i64, tpu.core_type = #tpu.core_type<tc>, window_params = [{transform_indices = @transform_0, window_bounds = array<i64: 32, 128>}, {pipeline_mode = #tpu.pipeline_mode<synchronous>, transform_indices = @transform_1, window_bounds = array<i64: 128, 128>}, {pipeline_mode = #tpu.pipeline_mode<synchronous>, transform_indices = @transform_2, window_bounds = array<i64: 3, 128, 128>}, {pipeline_mode = #tpu.pipeline_mode<synchronous>, transform_indices = @transform_3, window_bounds = array<i64: 4, 128>}, {transform_indices = @transform_4, window_bounds = array<i64: 32, 8>}]} {
    %c0 = arith.constant 0 : index
    %c0_0 = arith.constant 0 : index
    %0 = vector.load %arg1[%c0, %c0_0] : memref<32x128xf32, #tpu.memory_space<vmem>>, vector<32x128xf32>
    %c0_1 = arith.constant 0 : index
    %c0_2 = arith.constant 0 : index
    %1 = vector.load %arg2[%c0_1, %c0_2] : memref<128x128xf32, #tpu.memory_space<vmem>>, vector<128x128xf32>
    %cst = arith.constant dense<0.000000e+00> : vector<32x128xf32>
    %2 = tpu.matmul %0, %1, %cst {dimension_numbers = #tpu.dot_dimension_numbers<[1], [0], [0], [1], [0, 0, 1, 1], [], []>} : vector<32x128xf32>, vector<128x128xf32>, vector<32x128xf32> -> vector<32x128xf32>
    %c0_3 = arith.constant 0 : index
    %c0_4 = arith.constant 0 : index
    %3 = vector.load %arg4[%c0_3, %c0_4] : memref<4x128xf32, #tpu.memory_space<vmem>>, vector<1x128xf32>
    %4 = vector.broadcast %3 : vector<1x128xf32> to vector<32x128xf32>
    %5 = arith.addf %2, %4 : vector<32x128xf32>
    %cst_5 = arith.constant 0.000000e+00 : f32
    %6 = vector.broadcast %cst_5 : f32 to vector<32x128xf32>
    %7 = arith.maximumf %5, %6 : vector<32x128xf32>
    %c0_6 = arith.constant 0 : index
    %c0_7 = arith.constant 0 : index
    %c0_8 = arith.constant 0 : index
    %8 = vector.load %arg3[%c0_6, %c0_7, %c0_8] : memref<3x128x128xf32, #tpu.memory_space<vmem>>, vector<1x128x128xf32>
    %9 = vector.shape_cast %8 : vector<1x128x128xf32> to vector<128x128xf32>
    %cst_9 = arith.constant dense<0.000000e+00> : vector<32x128xf32>
    %10 = tpu.matmul %7, %9, %cst_9 {dimension_numbers = #tpu.dot_dimension_numbers<[1], [0], [0], [1], [0, 0, 1, 1], [], []>} : vector<32x128xf32>, vector<128x128xf32>, vector<32x128xf32> -> vector<32x128xf32>
    %c1 = arith.constant 1 : index
    %c0_10 = arith.constant 0 : index
    %11 = vector.load %arg4[%c1, %c0_10] : memref<4x128xf32, #tpu.memory_space<vmem>>, vector<1x128xf32>
    %12 = vector.broadcast %11 : vector<1x128xf32> to vector<32x128xf32>
    %13 = arith.addf %10, %12 : vector<32x128xf32>
    %cst_11 = arith.constant 0.000000e+00 : f32
    %14 = vector.broadcast %cst_11 : f32 to vector<32x128xf32>
    %15 = arith.maximumf %13, %14 : vector<32x128xf32>
    %c1_12 = arith.constant 1 : index
    %c0_13 = arith.constant 0 : index
    %c0_14 = arith.constant 0 : index
    %16 = vector.load %arg3[%c1_12, %c0_13, %c0_14] : memref<3x128x128xf32, #tpu.memory_space<vmem>>, vector<1x128x128xf32>
    %17 = vector.shape_cast %16 : vector<1x128x128xf32> to vector<128x128xf32>
    %cst_15 = arith.constant dense<0.000000e+00> : vector<32x128xf32>
    %18 = tpu.matmul %15, %17, %cst_15 {dimension_numbers = #tpu.dot_dimension_numbers<[1], [0], [0], [1], [0, 0, 1, 1], [], []>} : vector<32x128xf32>, vector<128x128xf32>, vector<32x128xf32> -> vector<32x128xf32>
    %c2 = arith.constant 2 : index
    %c0_16 = arith.constant 0 : index
    %19 = vector.load %arg4[%c2, %c0_16] : memref<4x128xf32, #tpu.memory_space<vmem>>, vector<1x128xf32>
    %20 = vector.broadcast %19 : vector<1x128xf32> to vector<32x128xf32>
    %21 = arith.addf %18, %20 : vector<32x128xf32>
    %cst_17 = arith.constant 0.000000e+00 : f32
    %22 = vector.broadcast %cst_17 : f32 to vector<32x128xf32>
    %23 = arith.maximumf %21, %22 : vector<32x128xf32>
    %c2_18 = arith.constant 2 : index
    %c0_19 = arith.constant 0 : index
    %c0_20 = arith.constant 0 : index
    %24 = vector.load %arg3[%c2_18, %c0_19, %c0_20] : memref<3x128x128xf32, #tpu.memory_space<vmem>>, vector<1x128x128xf32>
    %25 = vector.shape_cast %24 : vector<1x128x128xf32> to vector<128x128xf32>
    %cst_21 = arith.constant dense<0.000000e+00> : vector<32x128xf32>
    %26 = tpu.matmul %23, %25, %cst_21 {dimension_numbers = #tpu.dot_dimension_numbers<[1], [0], [0], [1], [0, 0, 1, 1], [], []>} : vector<32x128xf32>, vector<128x128xf32>, vector<32x128xf32> -> vector<32x128xf32>
    %c3 = arith.constant 3 : index
    %c0_22 = arith.constant 0 : index
    %27 = vector.load %arg4[%c3, %c0_22] : memref<4x128xf32, #tpu.memory_space<vmem>>, vector<1x128xf32>
    %28 = vector.broadcast %27 : vector<1x128xf32> to vector<32x128xf32>
    %29 = arith.addf %26, %28 : vector<32x128xf32>
    %30 = vector.extract_strided_slice %29 {offsets = [0, 0], sizes = [32, 8], strides = [1, 1]} : vector<32x128xf32> to vector<32x8xf32>
    %c0_23 = arith.constant 0 : index
    %c0_24 = arith.constant 0 : index
    %31 = vector.load %arg5[%c0_23, %c0_24] : memref<32x8xf32, #tpu.memory_space<vmem>>, vector<32x8xf32>
    tpu.vector_store %arg5[%c0_23, %c0_24], %30 {strides = array<i32>} : memref<32x8xf32, #tpu.memory_space<vmem>>, vector<32x8xf32>,
    return
  }
  func.func @transform_0(%arg0: i32) -> (i32, i32) {
    %c0_i32 = arith.constant 0 : i32
    %c0_i32_0 = arith.constant 0 : i32
    return %arg0, %c0_i32 : i32, i32
  }
  func.func @transform_1(%arg0: i32) -> (i32, i32) {
    %c0_i32 = arith.constant 0 : i32
    %c0_i32_0 = arith.constant 0 : i32
    %c0_i32_1 = arith.constant 0 : i32
    return %c0_i32, %c0_i32_0 : i32, i32
  }
  func.func @transform_2(%arg0: i32) -> (i32, i32, i32) {
    %c0_i32 = arith.constant 0 : i32
    %c0_i32_0 = arith.constant 0 : i32
    %c0_i32_1 = arith.constant 0 : i32
    %c0_i32_2 = arith.constant 0 : i32
    return %c0_i32, %c0_i32_0, %c0_i32_1 : i32, i32, i32
  }
  func.func @transform_3(%arg0: i32) -> (i32, i32) {
    %c0_i32 = arith.constant 0 : i32
    %c0_i32_0 = arith.constant 0 : i32
    %c0_i32_1 = arith.constant 0 : i32
    return %c0_i32, %c0_i32_0 : i32, i32
  }
  func.func @transform_4(%arg0: i32) -> (i32, i32) {
    %c0_i32 = arith.constant 0 : i32
    %c0_i32_0 = arith.constant 0 : i32
    return %arg0, %c0_i32 : i32, i32
  }
}

</mosaic_0001>

<llo_original>
// kernel: encoder_forward.1
$region0: #{encoder_forward.1}
  #allocation0 [shape = 'u32[]', space=smem, size = 0x4, offset = 0x4, fixed_abs, tag = 'smem constant byte address 0x4 - core index']
  #allocation1 [shape = 'u32[144,128]{1,0:T(1,128)}', space=vmem, size = 0x12000, scoped, tag = 'internal scratch']
  %s0 = inlined_call_operand.vmem [shape: f32[64,128], index: 0, kind: input, shape index: {}]
  %s1 = inlined_call_operand.vmem [shape: f32[128,128], index: 1, kind: input, shape index: {}]
  %s2 = inlined_call_operand.hbm [shape: f32[3,128,128], index: 2, kind: input, shape index: {}]
  %s3 = inlined_call_operand.vmem [shape: f32[4,128], index: 3, kind: input, shape index: {}]
  %s4 = inlined_call_operand.vmem [shape: f32[64,8], index: 4, kind: output, shape index: {}]
  %s5 = sld [smem:[#allocation0]]
  $region53: #{encoder_forward.1} parent=0
    _
  %s7 = ssub.s32 1, %s5
  %s8 = scalar_select 0, %s7, %s5
  $region1: #{encoder_forward.1} parent=0
    #allocation2 [shape = 'u8[196608]{0}', space=vmem, size = 0x30000, scoped, tag = 'input window, operand 2, single buffered']
    #allocation3 [shape = 's32[2]{0}', space=sflag, size = 0x8, scoped, tag = 'scoped memory for encoder_forward.1']
    %9 = vsyncpa [#allocation3], 0
    loop: start=0, step=1, limit=4
    $region2: #{encoder_forward.1} parent=1 // loop_pre_header
      _
    $region3: #{encoder_forward.1} parent=1 // loop_header
      %s11 = sphi 0, %s15
      %p12 = scmp.ge.s32.totalorder %s11, 4
      %s21 = sphi 0, %s23
      %s24 = sphi 0, %s21
      %s25 = sphi 0, %s24
      %s41 = sphi 0, %s25
      %s45 = sphi 0, %s45
      %s47 = sphi 0, %s45
      %s48 = sphi 0, %s47
      %s62 = sphi 0, %s48
      %s66 = sphi 0, %s66
      %s68 = sphi 0, %s66
      %s69 = sphi 0, %s68
      %s83 = sphi 0, %s69
      %s87 = sphi 0, %s87
      %s89 = sphi 0, %s87
      %s90 = sphi 0, %s89
      %s104 = sphi 0, %s90
      %s110 = sphi 0, %s112
      %s113 = sphi 0, %s110
      %s114 = sphi 0, %s113
      %s130 = sphi 0, %s114
    $region4: #{encoder_forward.1} parent=1 // loop_header_branch
      %14 = sbr.rel (%p12) target = $region8
    $region5: #{encoder_forward.1} parent=1 // loop_body
      %s16 = ssub.s32 %s11, 1
      %s17 = ssub.s32 %s11, 2
      %s18 = sadd.s32 %s11, 1
      %s19 = ssub.s32 %s11, %s18
      %p20 = scmp.eq.s32.totalorder %s19, 0
      %s22 = sadd.s32 %s21, 1
      %s23 = scalar_select %p20, %s21, %s22
      %p26 = pneg %p20
      %p27 = scmp.eq.s32.totalorder %s11, 1
      %p28 = por %p26, %p27
      %p29 = scmp.ne.s32.totalorder %s21, %s24
      %p30 = scmp.eq.s32.totalorder %s11, 0
      %p31 = por %p29, %p30
      %p32 = scmp.ne.s32.totalorder %s21, %s24
      %p33 = scmp.eq.s32.totalorder %s16, 1
      %p34 = por %p32, %p33
      %p35 = scmp.ne.s32.totalorder %s24, %s25
      %p36 = scmp.eq.s32.totalorder %s16, 0
      %p37 = por %p35, %p36
      %p38 = scmp.ne.s32.totalorder %s24, %s25
      %p39 = scmp.eq.s32.totalorder %s17, 1
      %p40 = por %p38, %p39
      %p42 = scmp.ne.s32.totalorder %s25, %s41
      %p43 = scmp.eq.s32.totalorder %s17, 0
      %p44 = por %p42, %p43
      %s46 = sadd.s32 %s45, 1
      %p49 = scmp.eq.s32.totalorder %s11, 1
      %p50 = scmp.ne.s32.totalorder %s45, %s47
      %p51 = scmp.eq.s32.totalorder %s11, 0
      %p52 = por %p50, %p51
      %p53 = scmp.ne.s32.totalorder %s45, %s47
      %p54 = scmp.eq.s32.totalorder %s16, 1
      %p55 = por %p53, %p54
      %p56 = scmp.ne.s32.totalorder %s47, %s48
      %p57 = scmp.eq.s32.totalorder %s16, 0
      %p58 = por %p56, %p57
      %p59 = scmp.ne.s32.totalorder %s47, %s48
      %p60 = scmp.eq.s32.totalorder %s17, 1
      %p61 = por %p59, %p60
      %p63 = scmp.ne.s32.totalorder %s48, %s62
      %p64 = scmp.eq.s32.totalorder %s17, 0
      %p65 = por %p63, %p64
      %s67 = sadd.s32 %s66, 1
      %p70 = scmp.eq.s32.totalorder %s11, 1
      %p71 = scmp.ne.s32.totalorder %s66, %s68
      %p72 = scmp.eq.s32.totalorder %s11, 0
      %p73 = por %p71, %p72
      %p74 = scmp.ne.s32.totalorder %s66, %s68
      %p75 = scmp.eq.s32.totalorder %s16, 1
      %p76 = por %p74, %p75
      %p77 = scmp.ne.s32.totalorder %s68, %s69
      %p78 = scmp.eq.s32.totalorder %s16, 0
      %p79 = por %p77, %p78
      %p80 = scmp.ne.s32.totalorder %s68, %s69
      %p81 = scmp.eq.s32.totalorder %s17, 1
      %p82 = por %p80, %p81
      %p84 = scmp.ne.s32.totalorder %s69, %s83
      %p85 = scmp.eq.s32.totalorder %s17, 0
      %p86 = por %p84, %p85
      %s88 = sadd.s32 %s87, 1
      %p91 = scmp.eq.s32.totalorder %s11, 1
      %p92 = scmp.ne.s32.totalorder %s87, %s89
      %p93 = scmp.eq.s32.totalorder %s11, 0
      %p94 = por %p92, %p93
      %p95 = scmp.ne.s32.totalorder %s87, %s89
      %p96 = scmp.eq.s32.totalorder %s16, 1
      %p97 = por %p95, %p96
      %p98 = scmp.ne.s32.totalorder %s89, %s90
      %p99 = scmp.eq.s32.totalorder %s16, 0
      %p100 = por %p98, %p99
      %p101 = scmp.ne.s32.totalorder %s89, %s90
      %p102 = scmp.eq.s32.totalorder %s17, 1
      %p103 = por %p101, %p102
      %p105 = scmp.ne.s32.totalorder %s90, %s104
      %p106 = scmp.eq.s32.totalorder %s17, 0
      %p107 = por %p105, %p106
      %s108 = ssub.s32 %s11, %s18
      %p109 = scmp.eq.s32.totalorder %s108, 0
      %s111 = sadd.s32 %s110, 1
      %s112 = scalar_select %p109, %s110, %s111
      %p115 = pneg %p109
      %p116 = scmp.eq.s32.totalorder %s11, 1
      %p117 = por %p115, %p116
      %p118 = scmp.ne.s32.totalorder %s110, %s113
      %p119 = scmp.eq.s32.totalorder %s11, 0
      %p120 = por %p118, %p119
      %p121 = scmp.ne.s32.totalorder %s110, %s113
      %p122 = scmp.eq.s32.totalorder %s16, 1
      %p123 = por %p121, %p122
      %p124 = scmp.ne.s32.totalorder %s113, %s114
      %p125 = scmp.eq.s32.totalorder %s16, 0
      %p126 = por %p124, %p125
      %p127 = scmp.ne.s32.totalorder %s113, %s114
      %p128 = scmp.eq.s32.totalorder %s17, 1
      %p129 = por %p127, %p128
      %p131 = scmp.ne.s32.totalorder %s114, %s130
      %p132 = scmp.eq.s32.totalorder %s17, 0
      %p133 = por %p131, %p132
      %p134 = scmp.le.s32.totalorder 1, %s11
      %p135 = scmp.lt.s32.totalorder %s11, 3
      %p136 = pnand %p134, %p135
      %p137 = pneg %p136
      // Predicated region
      $region9: #{encoder_forward.1} parent=5 // pred_check
        _
      $region10: #{encoder_forward.1} parent=5 // pred_check_branch
        %139 = sbr.rel (%p136) target = $region12
      $region11: #{encoder_forward.1} parent=5 // pred_region
        %s140 = ssub.s32 %s11, 1
        // Predicated region
        $region13: #{encoder_forward.1} parent=11 // pred_check
          %p141 = pneg %p58
        $region14: #{encoder_forward.1} parent=11 // pred_check_branch
          %143 = sbr.rel (%p141) target = $region16
        $region15: #{encoder_forward.1} parent=11 // pred_region
          _
        $region16: #{encoder_forward.1} parent=11 // pred_fallthru
          _
        // Predicated region
        $region17: #{encoder_forward.1} parent=11 // pred_check
          %p144 = pneg %p79
        $region18: #{encoder_forward.1} parent=11 // pred_check_branch
          %146 = sbr.rel (%p144) target = $region20
        $region19: #{encoder_forward.1} parent=11 // pred_region
          %s148 = ssub.s32 6144, 6144
          %149 = vsyncadd [#allocation3], %s148
          %s150 = sshll.u32 [#allocation2], 4
          %s151 = int_to_ptr.vmem [resolvable:$true] %s150
          %156 = dma.hbm_to_vmem [thread:$0]  %s2, 6144, %s151, [#allocation3], 128, 128, 8
        $region20: #{encoder_forward.1} parent=11 // pred_fallthru
          _
        // Predicated region
        $region21: #{encoder_forward.1} parent=11 // pred_check
          %p157 = pneg %p100
        $region22: #{encoder_forward.1} parent=11 // pred_check_branch
          %159 = sbr.rel (%p157) target = $region24
        $region23: #{encoder_forward.1} parent=11 // pred_region
          _
        $region24: #{encoder_forward.1} parent=11 // pred_fallthru
          _
      $region12: #{encoder_forward.1} parent=5 // pred_fallthru
        _
      %p160 = scmp.lt.s32.totalorder %s11, 2
      // Predicated region
      $region25: #{encoder_forward.1} parent=5 // pred_check
        %p161 = pneg %p160
      $region26: #{encoder_forward.1} parent=5 // pred_check_branch
        %163 = sbr.rel (%p161) target = $region28
      $region27: #{encoder_forward.1} parent=5 // pred_region
        // Predicated region
        $region29: #{encoder_forward.1} parent=27 // pred_check
          %p164 = pneg %p31
        $region30: #{encoder_forward.1} parent=27 // pred_check_branch
          %166 = sbr.rel (%p164) target = $region32
        $region31: #{encoder_forward.1} parent=27 // pred_region
          %s167 = smul.u32 4, %s11
          %p168 = scmp.lt.s32.totalorder %s167, 7
          %s169 = scalar_select %p168, %s167, 7
          %s170 = smul.addr %s169, 8
          %s171 = scalar_lea.vmem %s0, %s170
          %s172 = smul.u32 4, %s11
        $region32: #{encoder_forward.1} parent=27 // pred_fallthru
          _
      $region28: #{encoder_forward.1} parent=5 // pred_fallthru
        _
      %p173 = scmp.le.s32.totalorder 1, %s11
      %p174 = scmp.lt.s32.totalorder %s11, 3
      %p175 = pnand %p173, %p174
      %p176 = pneg %p175
      // Predicated region
      $region33: #{encoder_forward.1} parent=5 // pred_check
        _
      $region34: #{encoder_forward.1} parent=5 // pred_check_branch
        %178 = sbr.rel (%p175) target = $region36
      $region35: #{encoder_forward.1} parent=5 // pred_region
        %s179 = ssub.s32 %s11, 1
        // Predicated region
        $region37: #{encoder_forward.1} parent=35 // pred_check
          %p180 = pneg %p79
        $region38: #{encoder_forward.1} parent=35 // pred_check_branch
          %182 = sbr.rel (%p180) target = $region40
        $region39: #{encoder_forward.1} parent=35 // pred_region
          %183 = dma.done [#allocation3], 6144
        $region40: #{encoder_forward.1} parent=35 // pred_fallthru
          _
        %s184 = smul.u32 4, %s16
        %p185 = scmp.lt.s32.totalorder %s184, 7
        %s186 = scalar_select %p185, %s184, 7
        %s187 = smul.addr %s186, 8
        %s188 = scalar_lea.vmem %s0, %s187
        %p189 = pneg %p37
        %p190 = pneg %p34
        %p191 = pneg %p58
        %p192 = pneg %p55
        %p193 = pneg %p79
        %p194 = pneg %p76
        %p195 = pneg %p100
        %p196 = pneg %p97
        %p197 = pneg %p126
        %p198 = pneg %p123
        %s199 = smul.u32 4, %s16
        %p200 = scmp.lt.s32.totalorder %s199, 7
        %s201 = scalar_select %p200, %s199, 7
        %s202 = smul.addr %s201, 8
        %s203 = scalar_lea.vmem %s4, %s202
        %s204 = smul.u32 4, %s16
        %p205 = scmp.lt.s32.totalorder %s204, 7
        %s206 = scalar_select %p205, %s204, 7
        %s207 = smul.addr %s206, 8
        %s208 = scalar_lea.vmem %s0, %s207
        %s209 = smul.u32 4, %s16
        %s210 = smul.u32 4, %s16
        %p211 = scmp.lt.s32.totalorder %s210, 7
        %s212 = scalar_select %p211, %s210, 7
        %s213 = smul.addr %s212, 8
        %s214 = scalar_lea.vmem %s4, %s213
        %s215 = smul.u32 4, %s16
        %v216 = vld [vmem:[%s208] sm:$0xff]
        %v217 = vld [vmem:[%s208 + $0x8] sm:$0xff]
        %v218 = vld [vmem:[%s208 + $0x10] sm:$0xff]
        %v219 = vld [vmem:[%s208 + $0x18] sm:$0xff]
        %v220 = vld [vmem:[%s1] sm:$0xff]
        %v221 = vld [vmem:[%s1 + $0x8] sm:$0xff]
        %v222 = vld [vmem:[%s1 + $0x10] sm:$0xff]
        %v223 = vld [vmem:[%s1 + $0x18] sm:$0xff]
        %v224 = vld [vmem:[%s1 + $0x20] sm:$0xff]
        %v225 = vld [vmem:[%s1 + $0x28] sm:$0xff]
        %v226 = vld [vmem:[%s1 + $0x30] sm:$0xff]
        %v227 = vld [vmem:[%s1 + $0x38] sm:$0xff]
        %v228 = vld [vmem:[%s1 + $0x40] sm:$0xff]
        %v229 = vld [vmem:[%s1 + $0x48] sm:$0xff]
        %v230 = vld [vmem:[%s1 + $0x50] sm:$0xff]
        %v231 = vld [vmem:[%s1 + $0x58] sm:$0xff]
        %v232 = vld [vmem:[%s1 + $0x60] sm:$0xff]
        %v233 = vld [vmem:[%s1 + $0x68] sm:$0xff]
        %v234 = vld [vmem:[%s1 + $0x70] sm:$0xff]
        %v235 = vld [vmem:[%s1 + $0x78] sm:$0xff]
        %v236 = vld [vmem:[%s3] sm:$0x1]
        %v237 = vlaneseq
        %v238 = vshrl.u32 %v237, 7
        %v239 = vsub.s32 0, %v238
        %v240 = vrot.slane %v236, %v239
        %241 = vmatprep.subr.mxu0 0.0
        %242 = vmatpush1.msra.mxu0 %v235
        %243 = vmatprep.subr.mxu0 0.0
        %244 = vmatpush1.msra.mxu0 %v234
        %245 = vmatprep.subr.mxu0 0.0
        %246 = vmatpush1.msra.mxu0 %v233
        %247 = vmatprep.subr.mxu0 0.0
        %248 = vmatpush1.msra.mxu0 %v232
        %249 = vmatprep.subr.mxu0 0.0
        %250 = vmatpush1.msra.mxu0 %v231
        %251 = vmatprep.subr.mxu0 0.0
        %252 = vmatpush1.msra.mxu0 %v230
        %253 = vmatprep.subr.mxu0 0.0
        %254 = vmatpush1.msra.mxu0 %v229
        %255 = vmatprep.subr.mxu0 0.0
        %256 = vmatpush1.msra.mxu0 %v228
        %257 = vmatprep.subr.mxu0 0.0
        %258 = vmatpush1.msra.mxu0 %v227
        %259 = vmatprep.subr.mxu0 0.0
        %260 = vmatpush1.msra.mxu0 %v226
        %261 = vmatprep.subr.mxu0 0.0
        %262 = vmatpush1.msra.mxu0 %v225
        %263 = vmatprep.subr.mxu0 0.0
        %264 = vmatpush1.msra.mxu0 %v224
        %265 = vmatprep.subr.mxu0 0.0
        %266 = vmatpush1.msra.mxu0 %v223
        %267 = vmatprep.subr.mxu0 0.0
        %268 = vmatpush1.msra.mxu0 %v222
        %269 = vmatprep.subr.mxu0 0.0
        %270 = vmatpush1.msra.mxu0 %v221
        %271 = vmatprep.subr.mxu0 0.0
        %272 = vmatpush1.msra.mxu0 %v220
        %273 = vmatprep.subr.mxu0 0.0
        %274 = vmatpush2.msra.mxu0 0.0
        %275 = vmatprep.subr.mxu0 0.0
        %276 = vmatpush2.msra.mxu0 0.0
        %277 = vmatprep.subr.mxu0 0.0
        %278 = vmatpush2.msra.mxu0 0.0
        %279 = vmatprep.subr.mxu0 0.0
        %280 = vmatpush2.msra.mxu0 0.0
        %281 = vmatprep.subr.mxu0 0.0
        %282 = vmatpush2.msra.mxu0 0.0
        %283 = vmatprep.subr.mxu0 0.0
        %284 = vmatpush2.msra.mxu0 0.0
        %285 = vmatprep.subr.mxu0 0.0
        %286 = vmatpush2.msra.mxu0 0.0
        %287 = vmatprep.subr.mxu0 0.0
        %288 = vmatpush2.msra.mxu0 0.0
        %289 = vmatprep.subr.mxu0 0.0
        %290 = vmatpush2.msra.mxu0 0.0
        %291 = vmatprep.subr.mxu0 0.0
        %292 = vmatpush2.msra.mxu0 0.0
        %293 = vmatprep.subr.mxu0 0.0
        %294 = vmatpush2.msra.mxu0 0.0
        %295 = vmatprep.subr.mxu0 0.0
        %296 = vmatpush2.msra.mxu0 0.0
        %297 = vmatprep.subr.mxu0 0.0
        %298 = vmatpush2.msra.mxu0 0.0
        %299 = vmatprep.subr.mxu0 0.0
        %300 = vmatpush2.msra.mxu0 0.0
        %301 = vmatprep.subr.mxu0 0.0
        %302 = vmatpush2.msra.mxu0 0.0
        %303 = vmatprep.subr.mxu0 0.0
        %304 = vmatpush2.msra.mxu0 0.0
        %305 = vmatprep.mubr.f32.mxu0 0.0
        %306 = vmatmul.mubr.f32.gmra.mxu0 %v216
        %v307 = vpop.f32.mrf.mxu0
        %v308 = vadd.f32 %v240, %v307
        %v309 = vpop.f32.mrf.mxu0
        %310 = vmatprep.mubr.f32.mxu0 0.0
        %311 = vmatmul.mubr.f32.gmra.mxu0 %v217
        %v312 = vpop.f32.mrf.mxu0
        %v313 = vadd.f32 %v240, %v312
        %v314 = vpop.f32.mrf.mxu0
        %315 = vmatprep.mubr.f32.mxu0 0.0
        %316 = vmatmul.mubr.f32.gmra.mxu0 %v218
        %v317 = vpop.f32.mrf.mxu0
        %v318 = vadd.f32 %v240, %v317
        %v319 = vpop.f32.mrf.mxu0
        %320 = vmatprep.mubr.f32.mxu0 0.0
        %321 = vmatmul.mubr.f32.gmra.mxu0 %v219
        %v322 = vpop.f32.mrf.mxu0
        %v323 = vadd.f32 %v240, %v322
        %v324 = vpop.f32.mrf.mxu0
        %325 = vdwg.mxu0
        %v326 = vmax.f32 %v308, 0.0
        %v327 = vmax.f32 %v313, 0.0
        %v328 = vmax.f32 %v318, 0.0
        %v329 = vmax.f32 %v323, 0.0
        %v330 = vld [vmem:[#allocation2] sm:$0xff]
        %v331 = vld [vmem:[#allocation2 + $0x8] sm:$0xff]
        %v332 = vld [vmem:[#allocation2 + $0x10] sm:$0xff]
        %v333 = vld [vmem:[#allocation2 + $0x18] sm:$0xff]
        %v334 = vld [vmem:[#allocation2 + $0x20] sm:$0xff]
        %v335 = vld [vmem:[#allocation2 + $0x28] sm:$0xff]
        %v336 = vld [vmem:[#allocation2 + $0x30] sm:$0xff]
        %v337 = vld [vmem:[#allocation2 + $0x38] sm:$0xff]
        %v338 = vld [vmem:[#allocation2 + $0x40] sm:$0xff]
        %v339 = vld [vmem:[#allocation2 + $0x48] sm:$0xff]
        %v340 = vld [vmem:[#allocation2 + $0x50] sm:$0xff]
        %v341 = vld [vmem:[#allocation2 + $0x58] sm:$0xff]
        %v342 = vld [vmem:[#allocation2 + $0x60] sm:$0xff]
        %v343 = vld [vmem:[#allocation2 + $0x68] sm:$0xff]
        %v344 = vld [vmem:[#allocation2 + $0x70] sm:$0xff]
        %v345 = vld [vmem:[#allocation2 + $0x78] sm:$0xff]
        %v346 = vld [vmem:[%s3 + $0x1] sm:$0x1]
        %v347 = vlaneseq
        %v348 = vshrl.u32 %v347, 7
        %v349 = vsub.s32 0, %v348
        %v350 = vrot.slane %v346, %v349
        %351 = vmatprep.subr.mxu0 0.0
        %352 = vmatpush1.msra.mxu0 %v345
        %353 = vmatprep.subr.mxu0 0.0
        %354 = vmatpush1.msra.mxu0 %v344
        %355 = vmatprep.subr.mxu0 0.0
        %356 = vmatpush1.msra.mxu0 %v343
        %357 = vmatprep.subr.mxu0 0.0
        %358 = vmatpush1.msra.mxu0 %v342
        %359 = vmatprep.subr.mxu0 0.0
        %360 = vmatpush1.msra.mxu0 %v341
        %361 = vmatprep.subr.mxu0 0.0
        %362 = vmatpush1.msra.mxu0 %v340
        %363 = vmatprep.subr.mxu0 0.0
        %364 = vmatpush1.msra.mxu0 %v339
        %365 = vmatprep.subr.mxu0 0.0
        %366 = vmatpush1.msra.mxu0 %v338
        %367 = vmatprep.subr.mxu0 0.0
        %368 = vmatpush1.msra.mxu0 %v337
        %369 = vmatprep.subr.mxu0 0.0
        %370 = vmatpush1.msra.mxu0 %v336
        %371 = vmatprep.subr.mxu0 0.0
        %372 = vmatpush1.msra.mxu0 %v335
        %373 = vmatprep.subr.mxu0 0.0
        %374 = vmatpush1.msra.mxu0 %v334
        %375 = vmatprep.subr.mxu0 0.0
        %376 = vmatpush1.msra.mxu0 %v333
        %377 = vmatprep.subr.mxu0 0.0
        %378 = vmatpush1.msra.mxu0 %v332
        %379 = vmatprep.subr.mxu0 0.0
        %380 = vmatpush1.msra.mxu0 %v331
        %381 = vmatprep.subr.mxu0 0.0
        %382 = vmatpush1.msra.mxu0 %v330
        %383 = vmatprep.subr.mxu0 0.0
        %384 = vmatpush2.msra.mxu0 0.0
        %385 = vmatprep.subr.mxu0 0.0
        %386 = vmatpush2.msra.mxu0 0.0
        %387 = vmatprep.subr.mxu0 0.0
        %388 = vmatpush2.msra.mxu0 0.0
        %389 = vmatprep.subr.mxu0 0.0
        %390 = vmatpush2.msra.mxu0 0.0
        %391 = vmatprep.subr.mxu0 0.0
        %392 = vmatpush2.msra.mxu0 0.0
        %393 = vmatprep.subr.mxu0 0.0
        %394 = vmatpush2.msra.mxu0 0.0
        %395 = vmatprep.subr.mxu0 0.0
        %396 = vmatpush2.msra.mxu0 0.0
        %397 = vmatprep.subr.mxu0 0.0
        %398 = vmatpush2.msra.mxu0 0.0
        %399 = vmatprep.subr.mxu0 0.0
        %400 = vmatpush2.msra.mxu0 0.0
        %401 = vmatprep.subr.mxu0 0.0
        %402 = vmatpush2.msra.mxu0 0.0
        %403 = vmatprep.subr.mxu0 0.0
        %404 = vmatpush2.msra.mxu0 0.0
        %405 = vmatprep.subr.mxu0 0.0
        %406 = vmatpush2.msra.mxu0 0.0
        %407 = vmatprep.subr.mxu0 0.0
        %408 = vmatpush2.msra.mxu0 0.0
        %409 = vmatprep.subr.mxu0 0.0
        %410 = vmatpush2.msra.mxu0 0.0
        %411 = vmatprep.subr.mxu0 0.0
        %412 = vmatpush2.msra.mxu0 0.0
        %413 = vmatprep.subr.mxu0 0.0
        %414 = vmatpush2.msra.mxu0 0.0
        %415 = vmatprep.mubr.f32.mxu0 0.0
        %416 = vmatmul.mubr.f32.gmra.mxu0 %v326
        %v417 = vpop.f32.mrf.mxu0
        %v418 = vadd.f32 %v350, %v417
        %v419 = vpop.f32.mrf.mxu0
        %420 = vmatprep.mubr.f32.mxu0 0.0
        %421 = vmatmul.mubr.f32.gmra.mxu0 %v327
        %v422 = vpop.f32.mrf.mxu0
        %v423 = vadd.f32 %v350, %v422
        %v424 = vpop.f32.mrf.mxu0
        %425 = vmatprep.mubr.f32.mxu0 0.0
        %426 = vmatmul.mubr.f32.gmra.mxu0 %v328
        %v427 = vpop.f32.mrf.mxu0
        %v428 = vadd.f32 %v350, %v427
        %v429 = vpop.f32.mrf.mxu0
        %430 = vmatprep.mubr.f32.mxu0 0.0
        %431 = vmatmul.mubr.f32.gmra.mxu0 %v329
        %v432 = vpop.f32.mrf.mxu0
        %v433 = vadd.f32 %v350, %v432
        %v434 = vpop.f32.mrf.mxu0
        %435 = vdwg.mxu0
        %v436 = vmax.f32 %v418, 0.0
        %v437 = vmax.f32 %v423, 0.0
        %v438 = vmax.f32 %v428, 0.0
        %v439 = vmax.f32 %v433, 0.0
        %s440 = scalar_lea.vmem [#allocation2], 128
        %v441 = vld [vmem:[%s440] sm:$0xff]
        %v442 = vld [vmem:[%s440 + $0x8] sm:$0xff]
        %v443 = vld [vmem:[%s440 + $0x10] sm:$0xff]
        %v444 = vld [vmem:[%s440 + $0x18] sm:$0xff]
        %v445 = vld [vmem:[%s440 + $0x20] sm:$0xff]
        %v446 = vld [vmem:[%s440 + $0x28] sm:$0xff]
        %v447 = vld [vmem:[%s440 + $0x30] sm:$0xff]
        %v448 = vld [vmem:[%s440 + $0x38] sm:$0xff]
        %v449 = vld [vmem:[%s440 + $0x40] sm:$0xff]
        %v450 = vld [vmem:[%s440 + $0x48] sm:$0xff]
        %v451 = vld [vmem:[%s440 + $0x50] sm:$0xff]
        %v452 = vld [vmem:[%s440 + $0x58] sm:$0xff]
        %v453 = vld [vmem:[%s440 + $0x60] sm:$0xff]
        %v454 = vld [vmem:[%s440 + $0x68] sm:$0xff]
        %v455 = vld [vmem:[%s440 + $0x70] sm:$0xff]
        %v456 = vld [vmem:[%s440 + $0x78] sm:$0xff]
        %v457 = vld [vmem:[%s3 + $0x2] sm:$0x1]
        %v458 = vlaneseq
        %v459 = vshrl.u32 %v458, 7
        %v460 = vsub.s32 0, %v459
        %v461 = vrot.slane %v457, %v460
        %462 = vmatprep.subr.mxu0 0.0
        %463 = vmatpush1.msra.mxu0 %v456
        %464 = vmatprep.subr.mxu0 0.0
        %465 = vmatpush1.msra.mxu0 %v455
        %466 = vmatprep.subr.mxu0 0.0
        %467 = vmatpush1.msra.mxu0 %v454
        %468 = vmatprep.subr.mxu0 0.0
        %469 = vmatpush1.msra.mxu0 %v453
        %470 = vmatprep.subr.mxu0 0.0
        %471 = vmatpush1.msra.mxu0 %v452
        %472 = vmatprep.subr.mxu0 0.0
        %473 = vmatpush1.msra.mxu0 %v451
        %474 = vmatprep.subr.mxu0 0.0
        %475 = vmatpush1.msra.mxu0 %v450
        %476 = vmatprep.subr.mxu0 0.0
        %477 = vmatpush1.msra.mxu0 %v449
        %478 = vmatprep.subr.mxu0 0.0
        %479 = vmatpush1.msra.mxu0 %v448
        %480 = vmatprep.subr.mxu0 0.0
        %481 = vmatpush1.msra.mxu0 %v447
        %482 = vmatprep.subr.mxu0 0.0
        %483 = vmatpush1.msra.mxu0 %v446
        %484 = vmatprep.subr.mxu0 0.0
        %485 = vmatpush1.msra.mxu0 %v445
        %486 = vmatprep.subr.mxu0 0.0
        %487 = vmatpush1.msra.mxu0 %v444
        %488 = vmatprep.subr.mxu0 0.0
        %489 = vmatpush1.msra.mxu0 %v443
        %490 = vmatprep.subr.mxu0 0.0
        %491 = vmatpush1.msra.mxu0 %v442
        %492 = vmatprep.subr.mxu0 0.0
        %493 = vmatpush1.msra.mxu0 %v441
        %494 = vmatprep.subr.mxu0 0.0
        %495 = vmatpush2.msra.mxu0 0.0
        %496 = vmatprep.subr.mxu0 0.0
        %497 = vmatpush2.msra.mxu0 0.0
        %498 = vmatprep.subr.mxu0 0.0
        %499 = vmatpush2.msra.mxu0 0.0
        %500 = vmatprep.subr.mxu0 0.0
        %501 = vmatpush2.msra.mxu0 0.0
        %502 = vmatprep.subr.mxu0 0.0
        %503 = vmatpush2.msra.mxu0 0.0
        %504 = vmatprep.subr.mxu0 0.0
        %505 = vmatpush2.msra.mxu0 0.0
        %506 = vmatprep.subr.mxu0 0.0
        %507 = vmatpush2.msra.mxu0 0.0
        %508 = vmatprep.subr.mxu0 0.0
        %509 = vmatpush2.msra.mxu0 0.0
        %510 = vmatprep.subr.mxu0 0.0
        %511 = vmatpush2.msra.mxu0 0.0
        %512 = vmatprep.subr.mxu0 0.0
        %513 = vmatpush2.msra.mxu0 0.0
        %514 = vmatprep.subr.mxu0 0.0
        %515 = vmatpush2.msra.mxu0 0.0
        %516 = vmatprep.subr.mxu0 0.0
        %517 = vmatpush2.msra.mxu0 0.0
        %518 = vmatprep.subr.mxu0 0.0
        %519 = vmatpush2.msra.mxu0 0.0
        %520 = vmatprep.subr.mxu0 0.0
        %521 = vmatpush2.msra.mxu0 0.0
        %522 = vmatprep.subr.mxu0 0.0
        %523 = vmatpush2.msra.mxu0 0.0
        %524 = vmatprep.subr.mxu0 0.0
        %525 = vmatpush2.msra.mxu0 0.0
        %526 = vmatprep.mubr.f32.mxu0 0.0
        %527 = vmatmul.mubr.f32.gmra.mxu0 %v436
        %v528 = vpop.f32.mrf.mxu0
        %v529 = vadd.f32 %v461, %v528
        %v530 = vpop.f32.mrf.mxu0
        %531 = vmatprep.mubr.f32.mxu0 0.0
        %532 = vmatmul.mubr.f32.gmra.mxu0 %v437
        %v533 = vpop.f32.mrf.mxu0
        %v534 = vadd.f32 %v461, %v533
        %v535 = vpop.f32.mrf.mxu0
        %536 = vmatprep.mubr.f32.mxu0 0.0
        %537 = vmatmul.mubr.f32.gmra.mxu0 %v438
        %v538 = vpop.f32.mrf.mxu0
        %v539 = vadd.f32 %v461, %v538
        %v540 = vpop.f32.mrf.mxu0
        %541 = vmatprep.mubr.f32.mxu0 0.0
        %542 = vmatmul.mubr.f32.gmra.mxu0 %v439
        %v543 = vpop.f32.mrf.mxu0
        %v544 = vadd.f32 %v461, %v543
        %v545 = vpop.f32.mrf.mxu0
        %546 = vdwg.mxu0
        %v547 = vmax.f32 %v529, 0.0
        %v548 = vmax.f32 %v534, 0.0
        %v549 = vmax.f32 %v539, 0.0
        %v550 = vmax.f32 %v544, 0.0
        %s551 = scalar_lea.vmem [#allocation2], 256
        %v552 = vld [vmem:[%s551] sm:$0xff]
        %v553 = vld [vmem:[%s551 + $0x8] sm:$0xff]
        %v554 = vld [vmem:[%s551 + $0x10] sm:$0xff]
        %v555 = vld [vmem:[%s551 + $0x18] sm:$0xff]
        %v556 = vld [vmem:[%s551 + $0x20] sm:$0xff]
        %v557 = vld [vmem:[%s551 + $0x28] sm:$0xff]
        %v558 = vld [vmem:[%s551 + $0x30] sm:$0xff]
        %v559 = vld [vmem:[%s551 + $0x38] sm:$0xff]
        %v560 = vld [vmem:[%s551 + $0x40] sm:$0xff]
        %v561 = vld [vmem:[%s551 + $0x48] sm:$0xff]
        %v562 = vld [vmem:[%s551 + $0x50] sm:$0xff]
        %v563 = vld [vmem:[%s551 + $0x58] sm:$0xff]
        %v564 = vld [vmem:[%s551 + $0x60] sm:$0xff]
        %v565 = vld [vmem:[%s551 + $0x68] sm:$0xff]
        %v566 = vld [vmem:[%s551 + $0x70] sm:$0xff]
        %v567 = vld [vmem:[%s551 + $0x78] sm:$0xff]
        %v568 = vld [vmem:[%s3 + $0x3] sm:$0x1]
        %v569 = vlaneseq
        %v570 = vshrl.u32 %v569, 7
        %v571 = vsub.s32 0, %v570
        %v572 = vrot.slane %v568, %v571
        %573 = vmatprep.subr.mxu0 0.0
        %574 = vmatpush1.msra.mxu0 %v567
        %575 = vmatprep.subr.mxu0 0.0
        %576 = vmatpush1.msra.mxu0 %v566
        %577 = vmatprep.subr.mxu0 0.0
        %578 = vmatpush1.msra.mxu0 %v565
        %579 = vmatprep.subr.mxu0 0.0
        %580 = vmatpush1.msra.mxu0 %v564
        %581 = vmatprep.subr.mxu0 0.0
        %582 = vmatpush1.msra.mxu0 %v563
        %583 = vmatprep.subr.mxu0 0.0
        %584 = vmatpush1.msra.mxu0 %v562
        %585 = vmatprep.subr.mxu0 0.0
        %586 = vmatpush1.msra.mxu0 %v561
        %587 = vmatprep.subr.mxu0 0.0
        %588 = vmatpush1.msra.mxu0 %v560
        %589 = vmatprep.subr.mxu0 0.0
        %590 = vmatpush1.msra.mxu0 %v559
        %591 = vmatprep.subr.mxu0 0.0
        %592 = vmatpush1.msra.mxu0 %v558
        %593 = vmatprep.subr.mxu0 0.0
        %594 = vmatpush1.msra.mxu0 %v557
        %595 = vmatprep.subr.mxu0 0.0
        %596 = vmatpush1.msra.mxu0 %v556
        %597 = vmatprep.subr.mxu0 0.0
        %598 = vmatpush1.msra.mxu0 %v555
        %599 = vmatprep.subr.mxu0 0.0
        %600 = vmatpush1.msra.mxu0 %v554
        %601 = vmatprep.subr.mxu0 0.0
        %602 = vmatpush1.msra.mxu0 %v553
        %603 = vmatprep.subr.mxu0 0.0
        %604 = vmatpush1.msra.mxu0 %v552
        %605 = vmatprep.subr.mxu0 0.0
        %606 = vmatpush2.msra.mxu0 0.0
        %607 = vmatprep.subr.mxu0 0.0
        %608 = vmatpush2.msra.mxu0 0.0
        %609 = vmatprep.subr.mxu0 0.0
        %610 = vmatpush2.msra.mxu0 0.0
        %611 = vmatprep.subr.mxu0 0.0
        %612 = vmatpush2.msra.mxu0 0.0
        %613 = vmatprep.subr.mxu0 0.0
        %614 = vmatpush2.msra.mxu0 0.0
        %615 = vmatprep.subr.mxu0 0.0
        %616 = vmatpush2.msra.mxu0 0.0
        %617 = vmatprep.subr.mxu0 0.0
        %618 = vmatpush2.msra.mxu0 0.0
        %619 = vmatprep.subr.mxu0 0.0
        %620 = vmatpush2.msra.mxu0 0.0
        %621 = vmatprep.subr.mxu0 0.0
        %622 = vmatpush2.msra.mxu0 0.0
        %623 = vmatprep.subr.mxu0 0.0
        %624 = vmatpush2.msra.mxu0 0.0
        %625 = vmatprep.subr.mxu0 0.0
        %626 = vmatpush2.msra.mxu0 0.0
        %627 = vmatprep.subr.mxu0 0.0
        %628 = vmatpush2.msra.mxu0 0.0
        %629 = vmatprep.subr.mxu0 0.0
        %630 = vmatpush2.msra.mxu0 0.0
        %631 = vmatprep.subr.mxu0 0.0
        %632 = vmatpush2.msra.mxu0 0.0
        %633 = vmatprep.subr.mxu0 0.0
        %634 = vmatpush2.msra.mxu0 0.0
        %635 = vmatprep.subr.mxu0 0.0
        %636 = vmatpush2.msra.mxu0 0.0
        %637 = vmatprep.mubr.f32.mxu0 0.0
        %638 = vmatmul.mubr.f32.gmra.mxu0 %v547
        %v639 = vpop.f32.mrf.mxu0
        %v640 = vadd.f32 %v572, %v639
        %v641 = vpop.f32.mrf.mxu0
        %642 = vmatprep.mubr.f32.mxu0 0.0
        %643 = vmatmul.mubr.f32.gmra.mxu0 %v548
        %v644 = vpop.f32.mrf.mxu0
        %v645 = vadd.f32 %v572, %v644
        %v646 = vpop.f32.mrf.mxu0
        %647 = vmatprep.mubr.f32.mxu0 0.0
        %648 = vmatmul.mubr.f32.gmra.mxu0 %v549
        %v649 = vpop.f32.mrf.mxu0
        %v650 = vadd.f32 %v572, %v649
        %v651 = vpop.f32.mrf.mxu0
        %652 = vmatprep.mubr.f32.mxu0 0.0
        %653 = vmatmul.mubr.f32.gmra.mxu0 %v550
        %v654 = vpop.f32.mrf.mxu0
        %v655 = vadd.f32 %v572, %v654
        %v656 = vpop.f32.mrf.mxu0
        %657 = vdwg.mxu0
        %vm658 = vcmask 64512
        %659 = vst.msk [vmem:[%s214] sm:$0xff] %vm658, %v640
        %660 = vst.msk [vmem:[%s214 + $0x8] sm:$0xff] %vm658, %v645
        %661 = vst.msk [vmem:[%s214 + $0x10] sm:$0xff] %vm658, %v650
        %662 = vst.msk [vmem:[%s214 + $0x18] sm:$0xff] %vm658, %v655
        %s663 = smul.u32 4, %s16
        %p664 = scmp.lt.s32.totalorder %s663, 7
        %s665 = scalar_select %p664, %s663, 7
        %s666 = smul.addr %s665, 8
        %s667 = scalar_lea.vmem %s4, %s666
        // Predicated region
        $region41: #{encoder_forward.1} parent=35 // pred_check
          %p668 = pneg %p123
        $region42: #{encoder_forward.1} parent=35 // pred_check_branch
          %670 = sbr.rel (%p668) target = $region44
        $region43: #{encoder_forward.1} parent=35 // pred_region
          %s671 = smul.u32 4, %s16
        $region44: #{encoder_forward.1} parent=35 // pred_fallthru
          _
      $region36: #{encoder_forward.1} parent=5 // pred_fallthru
        _
      %p672 = scmp.le.s32.totalorder 2, %s11
      // Predicated region
      $region45: #{encoder_forward.1} parent=5 // pred_check
        %p673 = pneg %p672
      $region46: #{encoder_forward.1} parent=5 // pred_check_branch
        %675 = sbr.rel (%p673) target = $region48
      $region47: #{encoder_forward.1} parent=5 // pred_region
        %s676 = ssub.s32 %s11, 2
        // Predicated region
        $region49: #{encoder_forward.1} parent=47 // pred_check
          %p677 = pneg %p129
        $region50: #{encoder_forward.1} parent=47 // pred_check_branch
          %679 = sbr.rel (%p677) target = $region52
        $region51: #{encoder_forward.1} parent=47 // pred_region
          %s680 = smul.u32 4, %s17
          %p681 = scmp.lt.s32.totalorder %s680, 7
          %s682 = scalar_select %p681, %s680, 7
          %s683 = smul.addr %s682, 8
          %s684 = scalar_lea.vmem %s4, %s683
        $region52: #{encoder_forward.1} parent=47 // pred_fallthru
          _
      $region48: #{encoder_forward.1} parent=5 // pred_fallthru
        _
    $region6: #{encoder_forward.1} parent=1 // loop_footer
      %s15 = sadd.s32 1, %s11
    $region7: #{encoder_forward.1} parent=1 // loop_footer_branch
      %10 = sbr.rel target = $region3
    $region8: #{encoder_forward.1} parent=1 // loop_exit
      _
    %685 = vsyncpa [#allocation3], 1
    %s686 = scalar_lea.sflag [#allocation3], 1
    %687 = vsyncpa %s686, 1

</llo_original>
